<compile_context>
chip_gen: v7x
topology: tpu7x:2x2x1
jax: 0.10.0
libtpu: 0.0.40
codegen_flags: <defaults>
</compile_context>

<pallas_src>
import functools

import jax
import jax.numpy as jnp
from jax.experimental import pallas as pl
from jax.experimental.pallas import tpu as pltpu


_MIB = 1024 * 1024


def _vmem_budgets():
    """(vmem_limit_bytes, fused_block_budget_bytes), derived per TPU generation."""
    vmem = 0
    try:
        info = pltpu.get_tpu_info()
        vmem = int(getattr(info, "vmem_capacity_bytes", 0) or 0)
    except Exception:  # query unavailable (old runtime / interpret mode)
        vmem = 0
    if vmem <= 0:
        vmem = 64 * _MIB  # conservative fallback: assume v7x-sized VMEM
    # ~75% of physical, capped at 100 MiB:  128 MiB -> 96 MiB, 64 MiB -> 48 MiB.
    vmem_limit = min((vmem * 3) // 4, 100 * _MIB)
    fused_budget = max(vmem_limit - 8 * _MIB, 8 * _MIB)
    return vmem_limit, fused_budget


_TILED_BLOCK_TARGET = 8 * _MIB  # input-block bytes in the two-pass apply path


def _largest_lane_width(chw: int, max_lanes: int = 2048) -> int:
    """Widest multiple of 128 (<= max_lanes) that divides chw."""
    best = 128
    for lanes in range(128, min(max_lanes, chw) + 1, 128):
        if chw % lanes == 0:
            best = lanes
    return best


def _contrast_fused_kernel(img_ref, x_ref, out_ref, *, inv_chw):
    """One grid step = up to b whole samples; per-sample threshold in-kernel.

    The image block is read twice (once for the reduction, once for the apply)
    instead of holding one f32 temporary live across both, so bf16 inputs don't
    implicitly double the VMEM footprint.
    """
    xv = x_ref[...]                                              # (b, 1, 1) f32
    thr = jnp.sum(img_ref[...].astype(jnp.float32),
                  axis=(1, 2), keepdims=True) * inv_chw          # per-sample mean
    # image + (image - thr) * x_  ==  image * (1 + x_) - thr * x_   (2 ops/elem)
    out = img_ref[...].astype(jnp.float32) * (1.0 + xv) - thr * xv
    out_ref[...] = jnp.clip(out, 0.0, 1.0).astype(out_ref.dtype)


def _contrast_apply_kernel(img_ref, a_ref, b_ref, out_ref):
    """Tiled apply: out = clip(img * a - b); a/b are per-sample scalars in SMEM."""
    i = pl.program_id(0)
    a = a_ref[i]
    b = b_ref[i]
    out = img_ref[...].astype(jnp.float32) * a - b
    out_ref[...] = jnp.clip(out, 0.0, 1.0).astype(out_ref.dtype)


def contrast_filter(image, x, *, force_tiled=False, row_tile=None):
    """image: (n, 3, h, w) float in [0,1]; x: (n, 1, 1, 1) float in [-1,1]."""
    n, c, h, w = image.shape
    chw = c * h * w
    itemsize = jnp.dtype(image.dtype).itemsize
    vmem_limit, fused_budget = _vmem_budgets()

    # Flatten each sample to a lane-dense (rows, lanes) slab; pad to a multiple
    # of 128 if needed (zeros don't perturb the per-sample sum; mean uses 1/chw).
    chw_pad = ((chw + 127) // 128) * 128
    img2d = image.reshape(n, chw)
    if chw_pad != chw:
        img2d = jnp.pad(img2d, ((0, 0), (0, chw_pad - chw)))
    lanes = _largest_lane_width(chw_pad)
    rows = chw_pad // lanes
    img_flat = img2d.reshape(n, rows, lanes)

    # Hoist the scalar x -> x_ transform out of the kernel (n scalars, cheap).
    x_flat = x.reshape(n).astype(jnp.float32)
    x_pos = 255.0 / (256.0 - jnp.floor(x_flat * 255.0)) - 1.0
    x_ = jnp.where(x_flat > 0.0, x_pos, x_flat)                  # (n,)

    # VMEM for one grid step ~= (in + out) * double-buffer * per-sample bytes.
    per_sample_block_bytes = 4 * chw_pad * itemsize
    use_fused = (not force_tiled) and per_sample_block_bytes <= fused_budget

    if use_fused:
        # Pack as many whole samples per block as fit the budget; no divisibility
        # requirement (partial last block is read-padded / write-masked).
        b = max(1, min(n, fused_budget // per_sample_block_bytes))
        if n >= 2:
            b = min(b, pl.cdiv(n, 2))   # >= 2 grid steps: megacore + DMA overlap
        grid_steps = pl.cdiv(n, b)
        cost = pl.CostEstimate(
            flops=4 * n * chw_pad,
            transcendentals=0,
            bytes_accessed=2 * n * chw_pad * itemsize,
        )
        out = pl.pallas_call(
            functools.partial(_contrast_fused_kernel, inv_chw=1.0 / chw),
            out_shape=jax.ShapeDtypeStruct((n, rows, lanes), image.dtype),
            grid=(grid_steps,),
            in_specs=[
                pl.BlockSpec((b, rows, lanes), lambda i: (i, 0, 0)),
                pl.BlockSpec((b, 1, 1), lambda i: (i, 0, 0)),
            ],
            out_specs=pl.BlockSpec((b, rows, lanes), lambda i: (i, 0, 0)),
            compiler_params=pltpu.CompilerParams(
                dimension_semantics=("parallel",),
                vmem_limit_bytes=vmem_limit,
            ),
            cost_estimate=cost,
        )(img_flat, x_.reshape(n, 1, 1))
        out = out.reshape(n, chw_pad)
        if chw_pad != chw:
            out = out[:, :chw]
        return out.reshape(n, c, h, w)

    # Two-pass path (samples too large for the fused VMEM budget): per-sample
    # threshold via a fused XLA reduction, then a VMEM-bounded tiled apply kernel.
    thr = jnp.mean(image, axis=(1, 2, 3), dtype=jnp.float32)    # (n,), fused cast
    a = (1.0 + x_)                                              # (n,)
    b_scal = (thr * x_)                                         # (n,)

    if row_tile is None:
        tr = (_TILED_BLOCK_TARGET // (lanes * itemsize)) // 8 * 8
        tr = max(8, tr)
    else:
        tr = row_tile
    tr = min(tr, rows)
    if tr % 8 != 0 and tr != rows:
        tr = rows  # full-extent block is always a legal block shape

    cost = pl.CostEstimate(
        flops=4 * n * chw_pad,
        transcendentals=0,
        bytes_accessed=3 * n * chw_pad * itemsize,
    )
    out = pl.pallas_call(
        _contrast_apply_kernel,
        out_shape=jax.ShapeDtypeStruct((n, rows, lanes), image.dtype),
        grid=(n, pl.cdiv(rows, tr)),
        in_specs=[
            pl.BlockSpec((1, tr, lanes), lambda i, j: (i, j, 0)),
            pl.BlockSpec(memory_space=pltpu.MemorySpace.SMEM),   # a: (n,) scalars
            pl.BlockSpec(memory_space=pltpu.MemorySpace.SMEM),   # b: (n,) scalars
        ],
        out_specs=pl.BlockSpec((1, tr, lanes), lambda i, j: (i, j, 0)),
        compiler_params=pltpu.CompilerParams(
            dimension_semantics=("parallel", "parallel"),
            vmem_limit_bytes=vmem_limit,
        ),
        cost_estimate=cost,
    )(img_flat, a, b_scal)
    out = out.reshape(n, chw_pad)
    if chw_pad != chw:
        out = out[:, :chw]
    return out.reshape(n, c, h, w)


def _contrast_filter_ref(image, x):
    """Pure-JAX reference mirroring the PyTorch forward."""
    threshold = jnp.mean(image, axis=(1, 2, 3), keepdims=True)
    mask = (x > 0).astype(jnp.float32)
    x_pos = 255.0 / (256.0 - jnp.floor(x * 255.0)) - 1.0
    x_ = x * (1.0 - mask) + x_pos * mask
    out = image + (image - threshold) * x_
    return jnp.clip(out, 0.0, 1.0)


if __name__ == "__main__":
    key = jax.random.PRNGKey(0)
    k1, k2, k3, k4, k5, k6 = jax.random.split(key, 6)

    # 1) Small case: fused single-pass path, multiple samples packed per block.
    n, c, h, w = 2, 3, 16, 16
    image = jax.random.uniform(k1, (n, c, h, w), dtype=jnp.float32)            # [0, 1]
    x = jax.random.uniform(k2, (n, 1, 1, 1), dtype=jnp.float32,
                           minval=-1.0, maxval=1.0)                            # [-1, 1]
    out = jax.block_until_ready(contrast_filter(image, x))
    ref = _contrast_filter_ref(image, x)
    assert out.shape == (n, c, h, w)
    assert jnp.allclose(out, ref, atol=1e-5, rtol=1e-5), "fused path mismatch"

    # 2) Odd batch + c*h*w not a multiple of 128: cdiv packing + lane padding.
    n3, c3, h3, w3 = 3, 3, 15, 15
    image3 = jax.random.uniform(k5, (n3, c3, h3, w3), dtype=jnp.float32)
    x3 = jax.random.uniform(k6, (n3, 1, 1, 1), dtype=jnp.float32,
                            minval=-1.0, maxval=1.0)
    out3 = jax.block_until_ready(contrast_filter(image3, x3))
    ref3 = _contrast_filter_ref(image3, x3)
    assert out3.shape == (n3, c3, h3, w3)
    assert jnp.allclose(out3, ref3, atol=1e-5, rtol=1e-5), "padded fused mismatch"

    # 3) Two-pass tiled path (forced so the demo stays small; it triggers
    #    automatically for samples larger than the gen-aware fused VMEM budget).
    n2, c2, h2, w2 = 2, 3, 128, 128
    image2 = jax.random.uniform(k3, (n2, c2, h2, w2), dtype=jnp.float32)
    x2 = jax.random.uniform(k4, (n2, 1, 1, 1), dtype=jnp.float32,
                            minval=-1.0, maxval=1.0)
    out2 = jax.block_until_ready(
        contrast_filter(image2, x2, force_tiled=True, row_tile=8))
    ref2 = _contrast_filter_ref(image2, x2)
    assert out2.shape == (n2, c2, h2, w2)
    assert jnp.allclose(out2, ref2, atol=1e-5, rtol=1e-5), "tiled path mismatch"

    print("KERNEL_OK")
</pallas_src>

<mosaic_0001>
module attributes {stable_mosaic.version = 11 : i64} {
  func.func @_contrast_fused_kernel(%arg0: i32, %arg1: memref<1x1x768xf32, #tpu.memory_space<vmem>>, %arg2: memref<1x1x1xf32, #tpu.memory_space<vmem>>, %arg3: memref<1x1x768xf32, #tpu.memory_space<vmem>>) attributes {dimension_semantics = [#tpu.dimension_semantics<parallel>], iteration_bounds = array<i64: 2>, scalar_prefetch = 0 : i64, scratch_operands = 0 : i64, tpu.core_type = #tpu.core_type<tc>, window_params = [{transform_indices = @transform_0, window_bounds = array<i64: 1, 1, 768>}, {transform_indices = @transform_1, window_bounds = array<i64: 1, 1, 1>}, {transform_indices = @transform_2, window_bounds = array<i64: 1, 1, 768>}]} {
    %c0 = arith.constant 0 : index
    %c0_0 = arith.constant 0 : index
    %c0_1 = arith.constant 0 : index
    %0 = vector.load %arg2[%c0, %c0_0, %c0_1] : memref<1x1x1xf32, #tpu.memory_space<vmem>>, vector<1x1x1xf32>
    %c0_2 = arith.constant 0 : index
    %c0_3 = arith.constant 0 : index
    %c0_4 = arith.constant 0 : index
    %1 = vector.load %arg1[%c0_2, %c0_3, %c0_4] : memref<1x1x768xf32, #tpu.memory_space<vmem>>, vector<1x1x768xf32>
    %cst = arith.constant dense<0.000000e+00> : vector<1xf32>
    %2 = vector.multi_reduction <add>, %1, %cst [1, 2] : vector<1x1x768xf32> to vector<1xf32>
    %3 = vector.shape_cast %2 : vector<1xf32> to vector<1x1x1xf32>
    %cst_5 = arith.constant 0.00130208337 : f32
    %4 = vector.broadcast %cst_5 : f32 to vector<1x1x1xf32>
    %5 = arith.mulf %3, %4 : vector<1x1x1xf32>
    %c0_6 = arith.constant 0 : index
    %c0_7 = arith.constant 0 : index
    %c0_8 = arith.constant 0 : index
    %6 = vector.load %arg1[%c0_6, %c0_7, %c0_8] : memref<1x1x768xf32, #tpu.memory_space<vmem>>, vector<1x1x768xf32>
    %cst_9 = arith.constant 1.000000e+00 : f32
    %7 = vector.broadcast %cst_9 : f32 to vector<1x1x1xf32>
    %8 = arith.addf %7, %0 : vector<1x1x1xf32>
    %9 = vector.broadcast %8 : vector<1x1x1xf32> to vector<1x1x768xf32>
    %10 = arith.mulf %6, %9 : vector<1x1x768xf32>
    %11 = arith.mulf %5, %0 : vector<1x1x1xf32>
    %12 = vector.broadcast %11 : vector<1x1x1xf32> to vector<1x1x768xf32>
    %13 = arith.subf %10, %12 : vector<1x1x768xf32>
    %cst_10 = arith.constant 0.000000e+00 : f32
    %cst_11 = arith.constant 1.000000e+00 : f32
    %14 = vector.broadcast %cst_10 : f32 to vector<1x1x768xf32>
    %15 = arith.maximumf %14, %13 : vector<1x1x768xf32>
    %16 = vector.broadcast %cst_11 : f32 to vector<1x1x768xf32>
    %17 = arith.minimumf %16, %15 : vector<1x1x768xf32>
    %c0_12 = arith.constant 0 : index
    %c0_13 = arith.constant 0 : index
    %c0_14 = arith.constant 0 : index
    %18 = vector.load %arg3[%c0_12, %c0_13, %c0_14] : memref<1x1x768xf32, #tpu.memory_space<vmem>>, vector<1x1x768xf32>
    tpu.vector_store %arg3[%c0_12, %c0_13, %c0_14], %17 {strides = array<i32>} : memref<1x1x768xf32, #tpu.memory_space<vmem>>, vector<1x1x768xf32>,
    return
  }
  func.func @transform_0(%arg0: i32) -> (i32, i32, i32) {
    %c0_i32 = arith.constant 0 : i32
    %c0_i32_0 = arith.constant 0 : i32
    %c0_i32_1 = arith.constant 0 : i32
    return %arg0, %c0_i32, %c0_i32_0 : i32, i32, i32
  }
  func.func @transform_1(%arg0: i32) -> (i32, i32, i32) {
    %c0_i32 = arith.constant 0 : i32
    %c0_i32_0 = arith.constant 0 : i32
    %c0_i32_1 = arith.constant 0 : i32
    return %arg0, %c0_i32, %c0_i32_0 : i32, i32, i32
  }
  func.func @transform_2(%arg0: i32) -> (i32, i32, i32) {
    %c0_i32 = arith.constant 0 : i32
    %c0_i32_0 = arith.constant 0 : i32
    %c0_i32_1 = arith.constant 0 : i32
    return %arg0, %c0_i32, %c0_i32_0 : i32, i32, i32
  }
}

</mosaic_0001>

<llo_original>
// kernel: tpu_custom_call.1
$region0: #{tpu_custom_call.1}
  #allocation0 [shape = 'u32[]', space=smem, size = 0x4, offset = 0x4, fixed_abs, tag = 'smem constant byte address 0x4 - core index']
  #allocation1 [shape = 'u32[144,128]{1,0:T(1,128)}', space=vmem, size = 0x12000, scoped, tag = 'internal scratch']
  %s0 = inlined_call_operand.hbm [shape: f32[2,1,768], index: 0, kind: input, shape index: {}]
  %s1 = inlined_call_operand.vmem [shape: f32[2,1,1], index: 1, kind: input, shape index: {}]
  %s2 = inlined_call_operand.hbm [shape: f32[2,1,768], index: 2, kind: output, shape index: {}]
  %s3 = sld [smem:[#allocation0]]
  $region45: #{tpu_custom_call.1} parent=0
    _
  %s5 = ssub.s32 1, %s3
  %s6 = scalar_select 0, %s5, %s3
  $region1: #{tpu_custom_call.1} parent=0
    #allocation2 [shape = 'u8[6144]{0}', space=vmem, size = 0x1800, scoped, tag = 'input window, operand 0']
    #allocation3 [shape = 's32[2]{0}', space=sflag, size = 0x8, scoped, tag = 'scoped memory for tpu_custom_call.1']
    #allocation4 [shape = 's32[2]{0}', space=sflag, size = 0x8, scoped, tag = 'scoped memory for tpu_custom_call.1']
    #allocation5 [shape = 'u8[6144]{0}', space=vmem, size = 0x1800, scoped, tag = 'output window, operand 0']
    %7 = vsyncpa [#allocation3], 0
    %s8 = scalar_lea.sflag [#allocation3], 1
    %9 = vsyncpa %s8, 0
    %10 = vsyncpa [#allocation4], 0
    %s11 = scalar_lea.sflag [#allocation4], 1
    %12 = vsyncpa %s11, 0
    loop: start=0, step=1, limit=4
    $region2: #{tpu_custom_call.1} parent=1 // loop_pre_header
      _
    $region3: #{tpu_custom_call.1} parent=1 // loop_header
      %s14 = sphi 0, %s18
      %p15 = scmp.ge.s32.totalorder %s14, 4
      %s24 = sphi 0, %s26
      %s27 = sphi 0, %s24
      %s28 = sphi 0, %s27
      %s44 = sphi 0, %s28
      %s50 = sphi 0, %s52
      %s53 = sphi 0, %s50
      %s54 = sphi 0, %s53
      %s70 = sphi 0, %s54
      %s76 = sphi 0, %s78
      %s79 = sphi 0, %s76
      %s80 = sphi 0, %s79
      %s96 = sphi 0, %s80
    $region4: #{tpu_custom_call.1} parent=1 // loop_header_branch
      %17 = sbr.rel (%p15) target = $region8
    $region5: #{tpu_custom_call.1} parent=1 // loop_body
      %s19 = ssub.s32 %s14, 1
      %s20 = ssub.s32 %s14, 2
      %s21 = sadd.s32 %s14, 1
      %s22 = ssub.s32 %s14, %s21
      %p23 = scmp.eq.s32.totalorder %s22, 0
      %s25 = sadd.s32 %s24, 1
      %s26 = scalar_select %p23, %s24, %s25
      %p29 = pneg %p23
      %p30 = scmp.eq.s32.totalorder %s14, 1
      %p31 = por %p29, %p30
      %p32 = scmp.ne.s32.totalorder %s24, %s27
      %p33 = scmp.eq.s32.totalorder %s14, 0
      %p34 = por %p32, %p33
      %p35 = scmp.ne.s32.totalorder %s24, %s27
      %p36 = scmp.eq.s32.totalorder %s19, 1
      %p37 = por %p35, %p36
      %p38 = scmp.ne.s32.totalorder %s27, %s28
      %p39 = scmp.eq.s32.totalorder %s19, 0
      %p40 = por %p38, %p39
      %p41 = scmp.ne.s32.totalorder %s27, %s28
      %p42 = scmp.eq.s32.totalorder %s20, 1
      %p43 = por %p41, %p42
      %p45 = scmp.ne.s32.totalorder %s28, %s44
      %p46 = scmp.eq.s32.totalorder %s20, 0
      %p47 = por %p45, %p46
      %s48 = ssub.s32 %s14, %s21
      %p49 = scmp.eq.s32.totalorder %s48, 0
      %s51 = sadd.s32 %s50, 1
      %s52 = scalar_select %p49, %s50, %s51
      %p55 = pneg %p49
      %p56 = scmp.eq.s32.totalorder %s14, 1
      %p57 = por %p55, %p56
      %p58 = scmp.ne.s32.totalorder %s50, %s53
      %p59 = scmp.eq.s32.totalorder %s14, 0
      %p60 = por %p58, %p59
      %p61 = scmp.ne.s32.totalorder %s50, %s53
      %p62 = scmp.eq.s32.totalorder %s19, 1
      %p63 = por %p61, %p62
      %p64 = scmp.ne.s32.totalorder %s53, %s54
      %p65 = scmp.eq.s32.totalorder %s19, 0
      %p66 = por %p64, %p65
      %p67 = scmp.ne.s32.totalorder %s53, %s54
      %p68 = scmp.eq.s32.totalorder %s20, 1
      %p69 = por %p67, %p68
      %p71 = scmp.ne.s32.totalorder %s54, %s70
      %p72 = scmp.eq.s32.totalorder %s20, 0
      %p73 = por %p71, %p72
      %s74 = ssub.s32 %s14, %s21
      %p75 = scmp.eq.s32.totalorder %s74, 0
      %s77 = sadd.s32 %s76, 1
      %s78 = scalar_select %p75, %s76, %s77
      %p81 = pneg %p75
      %p82 = scmp.eq.s32.totalorder %s14, 1
      %p83 = por %p81, %p82
      %p84 = scmp.ne.s32.totalorder %s76, %s79
      %p85 = scmp.eq.s32.totalorder %s14, 0
      %p86 = por %p84, %p85
      %p87 = scmp.ne.s32.totalorder %s76, %s79
      %p88 = scmp.eq.s32.totalorder %s19, 1
      %p89 = por %p87, %p88
      %p90 = scmp.ne.s32.totalorder %s79, %s80
      %p91 = scmp.eq.s32.totalorder %s19, 0
      %p92 = por %p90, %p91
      %p93 = scmp.ne.s32.totalorder %s79, %s80
      %p94 = scmp.eq.s32.totalorder %s20, 1
      %p95 = por %p93, %p94
      %p97 = scmp.ne.s32.totalorder %s80, %s96
      %p98 = scmp.eq.s32.totalorder %s20, 0
      %p99 = por %p97, %p98
      %p100 = scmp.le.s32.totalorder 1, %s14
      %p101 = scmp.lt.s32.totalorder %s14, 3
      %p102 = pnand %p100, %p101
      %p103 = pneg %p102
      // Predicated region
      $region9: #{tpu_custom_call.1} parent=5 // pred_check
        _
      $region10: #{tpu_custom_call.1} parent=5 // pred_check_branch
        %105 = sbr.rel (%p102) target = $region12
      $region11: #{tpu_custom_call.1} parent=5 // pred_region
        %s106 = ssub.s32 %s14, 1
      $region12: #{tpu_custom_call.1} parent=5 // pred_fallthru
        _
      %p107 = scmp.lt.s32.totalorder %s14, 2
      // Predicated region
      $region13: #{tpu_custom_call.1} parent=5 // pred_check
        %p108 = pneg %p107
      $region14: #{tpu_custom_call.1} parent=5 // pred_check_branch
        %110 = sbr.rel (%p108) target = $region16
      $region15: #{tpu_custom_call.1} parent=5 // pred_region
        // Predicated region
        $region17: #{tpu_custom_call.1} parent=15 // pred_check
          %p111 = pneg %p34
        $region18: #{tpu_custom_call.1} parent=15 // pred_check_branch
          %113 = sbr.rel (%p111) target = $region20
        $region19: #{tpu_custom_call.1} parent=15 // pred_region
          %s114 = sand.u32 %s24, 1
          %s115 = scalar_lea.sflag [#allocation3], %s114
          %s116 = sand.u32 %s24, 1
          %s117 = smul.addr %s116, 6
          %s118 = scalar_lea.vmem [#allocation2], %s117
          %s120 = ssub.s32 96, 96
          %121 = vsyncadd %s115, %s120
          %s122 = smul.addr %s14, 6
          %s123 = smul.addr %s122, 16
          %s124 = scalar_lea.hbm %s0, %s123
          %s126 = sshll.u32 %s118, 4
          %s127 = int_to_ptr.vmem [resolvable:$true] %s126
          %129 = dma.hbm_to_vmem [thread:$0]  %s124, 96, %s127, %s115
        $region20: #{tpu_custom_call.1} parent=15 // pred_fallthru
          _
        // Predicated region
        $region21: #{tpu_custom_call.1} parent=15 // pred_check
          %p130 = pneg %p60
        $region22: #{tpu_custom_call.1} parent=15 // pred_check_branch
          %132 = sbr.rel (%p130) target = $region24
        $region23: #{tpu_custom_call.1} parent=15 // pred_region
          %p133 = scmp.lt.s32.totalorder %s14, 1
          %s134 = scalar_select %p133, %s14, 1
          %s135 = scalar_lea.vmem %s1, %s134
        $region24: #{tpu_custom_call.1} parent=15 // pred_fallthru
          _
      $region16: #{tpu_custom_call.1} parent=5 // pred_fallthru
        _
      %p136 = scmp.le.s32.totalorder 1, %s14
      %p137 = scmp.lt.s32.totalorder %s14, 3
      %p138 = pnand %p136, %p137
      %p139 = pneg %p138
      // Predicated region
      $region25: #{tpu_custom_call.1} parent=5 // pred_check
        _
      $region26: #{tpu_custom_call.1} parent=5 // pred_check_branch
        %141 = sbr.rel (%p138) target = $region28
      $region27: #{tpu_custom_call.1} parent=5 // pred_region
        %s142 = ssub.s32 %s14, 1
        %s143 = sand.u32 %s27, 1
        %s144 = scalar_lea.sflag [#allocation3], %s143
        %s145 = sand.u32 %s27, 1
        %s146 = smul.addr %s145, 6
        %s147 = scalar_lea.vmem [#allocation2], %s146
        // Predicated region
        $region29: #{tpu_custom_call.1} parent=27 // pred_check
          %p148 = pneg %p40
        $region30: #{tpu_custom_call.1} parent=27 // pred_check_branch
          %150 = sbr.rel (%p148) target = $region32
        $region31: #{tpu_custom_call.1} parent=27 // pred_region
          %151 = dma.done %s144, 96
        $region32: #{tpu_custom_call.1} parent=27 // pred_fallthru
          _
        %s152 = sand.u32 %s27, 1
        %s153 = scalar_lea.sflag [#allocation3], %s152
        %s154 = sand.u32 %s27, 1
        %s155 = smul.addr %s154, 6
        %s156 = scalar_lea.vmem [#allocation2], %s155
        %p157 = pneg %p40
        %p158 = pneg %p37
        %p159 = scmp.lt.s32.totalorder %s19, 1
        %s160 = scalar_select %p159, %s19, 1
        %s161 = scalar_lea.vmem %s1, %s160
        %p162 = pneg %p66
        %p163 = pneg %p63
        %p164 = pneg %p92
        %p165 = pneg %p89
        %s166 = sand.u32 %s79, 1
        %s167 = scalar_lea.sflag [#allocation4], %s166
        %s168 = sand.u32 %s79, 1
        %s169 = smul.addr %s168, 6
        %s170 = scalar_lea.vmem [#allocation5], %s169
        %p171 = scmp.lt.s32.totalorder %s19, 1
        %s172 = scalar_select %p171, %s19, 1
        %s173 = scalar_lea.vmem %s1, %s172
        %v174 = vld [vmem:[%s173] sm:$0x1]
        %v175 = vld [vmem:[%s147] sm:$0x3f]
        %v177 = vlaneseq
        %v178 = vshrl.u32 %v177, 7
        %v179 = vsub.s32 0, %v178
        %v180 = vrot.slane %v175, %v179
        %v181 = vlaneseq
        %v182 = vshrl.u32 %v181, 7
        %v183 = vsub.s32 1, %v182
        %v184 = vrot.slane %v175, %v183
        %v185 = vlaneseq
        %v186 = vshrl.u32 %v185, 7
        %v187 = vsub.s32 2, %v186
        %v188 = vrot.slane %v175, %v187
        %v189 = vlaneseq
        %v190 = vshrl.u32 %v189, 7
        %v191 = vsub.s32 3, %v190
        %v192 = vrot.slane %v175, %v191
        %v193 = vlaneseq
        %v194 = vshrl.u32 %v193, 7
        %v195 = vsub.s32 4, %v194
        %v196 = vrot.slane %v175, %v195
        %v197 = vlaneseq
        %v198 = vshrl.u32 %v197, 7
        %v199 = vsub.s32 5, %v198
        %v200 = vrot.slane %v175, %v199
        %vm207 = vcmask 1040384
        %v208 = vsel %vm207, %v180, 0.0
        %v209 = vsel %vm207, %v184, 0.0
        %v210 = vadd.f32 %v208, %v209
        %v211 = vsel %vm207, %v188, 0.0
        %v212 = vadd.f32 %v210, %v211
        %v213 = vsel %vm207, %v192, 0.0
        %v214 = vadd.f32 %v212, %v213
        %v215 = vsel %vm207, %v196, 0.0
        %v216 = vadd.f32 %v214, %v215
        %v217 = vsel %vm207, %v200, 0.0
        %v218 = vadd.f32 %v216, %v217
        %219 = vadd.xlane.f32.xlu0 %v218
        %v220 = vpop.xlane.xlu0 %219
        %v221 = vrot.slane %v220, 4
        %v222 = vadd.f32 %v220, %v221
        %v223 = vrot.slane %v222, 2
        %v224 = vadd.f32 %v222, %v223
        %v225 = vrot.slane %v224, 1
        %v226 = vadd.f32 %v224, %v225
        %v227 = vmul.f32 %v226, 0.0013020834
        %v228 = vadd.f32 %v174, 1.0
        %230 = vset.pattern.permute.xlu0 0
        %231 = vperm.xlu0 %230, %v228
        %v232 = vpop.permute.xlu0 %231
        %v234 = vlaneseq
        %v235 = vshrl.u32 %v234, 7
        %v236 = vsub.s32 0, %v235
        %v237 = vrot.slane %v232, %v236
        %v238 = vmul.f32 %v175, %v237
        %v239 = vmul.f32 %v227, %v174
        %241 = vset.pattern.permute.xlu0 0
        %242 = vperm.xlu0 %241, %v239
        %v243 = vpop.permute.xlu0 %242
        %v245 = vlaneseq
        %v246 = vshrl.u32 %v245, 7
        %v247 = vsub.s32 0, %v246
        %v248 = vrot.slane %v243, %v247
        %v249 = vsub.f32 %v238, %v248
        %v250 = vmax.f32 %v249, 0.0
        %v251 = vmin.f32 %v250, 1.0
        %v252 = vlaneseq
        %vm253 = vcmp.ge.s32.totalorder %v252, 0
        %vm254 = vcmp.lt.s32.totalorder %v252, 768
        %vm255 = vmand %vm253, %vm254
        %256 = vst.msk [vmem:[%s170] sm:$0x3f] %vm255, %v251
        %s257 = sand.u32 %s79, 1
        %s258 = scalar_lea.sflag [#allocation4], %s257
        %s259 = sand.u32 %s79, 1
        %s260 = smul.addr %s259, 6
        %s261 = scalar_lea.vmem [#allocation5], %s260
        // Predicated region
        $region33: #{tpu_custom_call.1} parent=27 // pred_check
          %p262 = pneg %p89
        $region34: #{tpu_custom_call.1} parent=27 // pred_check_branch
          %264 = sbr.rel (%p262) target = $region36
        $region35: #{tpu_custom_call.1} parent=27 // pred_region
          %s266 = ssub.s32 96, 96
          %267 = vsyncadd %s258, %s266
          %s268 = smul.addr %s19, 6
          %s269 = smul.addr %s268, 16
          %s270 = scalar_lea.hbm %s2, %s269
          %s272 = sshll.u32 %s261, 4
          %s273 = int_to_ptr.vmem [resolvable:$true] %s272
          %275 = dma.vmem_to_hbm [thread:$0]  %s273, 96, %s270, %s258
        $region36: #{tpu_custom_call.1} parent=27 // pred_fallthru
          _
      $region28: #{tpu_custom_call.1} parent=5 // pred_fallthru
        _
      %p276 = scmp.le.s32.totalorder 2, %s14
      // Predicated region
      $region37: #{tpu_custom_call.1} parent=5 // pred_check
        %p277 = pneg %p276
      $region38: #{tpu_custom_call.1} parent=5 // pred_check_branch
        %279 = sbr.rel (%p277) target = $region40
      $region39: #{tpu_custom_call.1} parent=5 // pred_region
        %s280 = ssub.s32 %s14, 2
        // Predicated region
        $region41: #{tpu_custom_call.1} parent=39 // pred_check
          %p281 = pneg %p95
        $region42: #{tpu_custom_call.1} parent=39 // pred_check_branch
          %283 = sbr.rel (%p281) target = $region44
        $region43: #{tpu_custom_call.1} parent=39 // pred_region
          %s284 = sand.u32 %s80, 1
          %s285 = scalar_lea.sflag [#allocation4], %s284
          %s286 = sand.u32 %s80, 1
          %s287 = smul.addr %s286, 6
          %s288 = scalar_lea.vmem [#allocation5], %s287
          %289 = dma.done %s285, 96
        $region44: #{tpu_custom_call.1} parent=39 // pred_fallthru
          _
      $region40: #{tpu_custom_call.1} parent=5 // pred_fallthru
        _
    $region6: #{tpu_custom_call.1} parent=1 // loop_footer
      %s18 = sadd.s32 1, %s14
    $region7: #{tpu_custom_call.1} parent=1 // loop_footer_branch
      %13 = sbr.rel target = $region3
    $region8: #{tpu_custom_call.1} parent=1 // loop_exit
      _
    %290 = vsyncpa [#allocation3], 1
    %s291 = scalar_lea.sflag [#allocation3], 1
    %292 = vsyncpa %s291, 1
    %293 = vsyncpa [#allocation4], 1
    %s294 = scalar_lea.sflag [#allocation4], 1
    %295 = vsyncpa %s294, 1

</llo_original>
